<compile_context>
chip_gen: v7x
topology: tpu7x:2x2x1
jax: 0.10.0
libtpu: 0.0.40
codegen_flags: <defaults>
</compile_context>

<pallas_src>
import functools

import jax
import jax.numpy as jnp
from jax import lax
from jax.experimental import pallas as pl
from jax.experimental.pallas import tpu as pltpu


def _round_up(x, m):
    return ((x + m - 1) // m) * m


def _focal_kernel(x_ref, t_ref, o_ref, acc_ref, *, gamma, ignore_index):
    n = pl.program_id(1)   # image index        (arbitrary / reduction axis)
    j = pl.program_id(2)   # pixel-tile index   (arbitrary / reduction axis)

    @pl.when((n == 0) & (j == 0))
    def _():
        acc_ref[...] = jnp.zeros_like(acc_ref)

    x = x_ref[...].astype(jnp.float32)     # (C, TILE)  logits, cast on load
    t = t_ref[...]                         # (1, TILE)  int32 targets

    # numerically stable softmax pieces, reducing over the class (sublane) axis
    m = jnp.max(x, axis=0, keepdims=True)                  # (1, TILE)
    z = x - m
    ez = jnp.exp(z)                                        # (C, TILE)
    sumexp = jnp.sum(ez, axis=0, keepdims=True)            # (1, TILE)
    lse = jnp.log(sumexp)                                  # (1, TILE)

    # gather z[target] / exp(z)[target] via one-hot on the class axis
    cls = lax.broadcasted_iota(jnp.int32, x.shape, 0)      # (C, TILE)
    onehot = cls == t                                      # broadcast (1, TILE)
    z_t = jnp.sum(jnp.where(onehot, z, 0.0), axis=0, keepdims=True)
    ez_t = jnp.sum(jnp.where(onehot, ez, 0.0), axis=0, keepdims=True)

    valid = t != ignore_index
    # cross-entropy per pixel: -log_softmax(x)[t] = lse - (x[t] - m)
    logpt = jnp.where(valid, lse - z_t, 0.0)               # (1, TILE)
    # pt = softmax(x)[t] == exp(-logpt), without an extra EUP exp
    pt = ez_t / sumexp                                     # (1, TILE)
    omp = jnp.maximum(1.0 - pt, 0.0)                       # clamp (avoids NaN in pow)

    if float(gamma) == int(gamma) and 0 <= int(gamma) <= 8:
        g = int(gamma)
        w = jnp.ones_like(omp) if g == 0 else omp
        for _ in range(max(g - 1, 0)):
            w = w * omp                                    # VALU multiplies, no pow
    else:
        w = jnp.power(omp, gamma)

    fl = jnp.where(valid, w * logpt, 0.0)                  # (1, TILE)

    # lane-dense accumulation (pure VALU); scalar reduce deferred to final step
    acc_ref[...] += fl

    @pl.when((n == pl.num_programs(1) - 1) & (j == pl.num_programs(2) - 1))
    def _():
        o_ref[...] = jnp.sum(acc_ref[...]).reshape(1, 1)


def focal_loss(logits, target, *, gamma=2.0, ignore_index=255, size_average=True,
               tile=2048, num_partials=2):
    """logits: (N, C, H, W) float (f32 or bf16); target: (N, H, W) int. Scalar loss."""
    N, C, H, W = logits.shape
    HW = H * W
    P = N * HW

    # Native layout — no transpose, just free reshapes.
    x = logits.reshape(N, C, HW)
    t = target.reshape(N, 1, HW).astype(jnp.int32)

    # Lane-dense pixel tile: multiple of 128, no larger than one (padded) image.
    tile = max(128, min(int(tile), _round_up(HW, 128)))
    tile = _round_up(tile, 128)
    # Pad pixels so tiles split evenly across the partial-sum (megacore) axis.
    HW_pad = _round_up(HW, tile * num_partials)
    if HW_pad != HW:
        x = jnp.pad(x, ((0, 0), (0, 0), (0, HW_pad - HW)))
        t = jnp.pad(t, ((0, 0), (0, 0), (0, HW_pad - HW)),
                    constant_values=ignore_index)
    tiles_per_part = (HW_pad // tile) // num_partials

    kernel = functools.partial(_focal_kernel, gamma=float(gamma),
                               ignore_index=int(ignore_index))

    def x_map(c, n, j):
        return (n, 0, c * tiles_per_part + j)

    def t_map(c, n, j):
        return (n, 0, c * tiles_per_part + j)

    out = pl.pallas_call(
        kernel,
        out_shape=jax.ShapeDtypeStruct((num_partials, 1, 1), jnp.float32),
        grid_spec=pltpu.PrefetchScalarGridSpec(
            num_scalar_prefetch=0,
            grid=(num_partials, N, tiles_per_part),
            in_specs=[
                pl.BlockSpec((pl.Squeezed(), C, tile), x_map),
                pl.BlockSpec((pl.Squeezed(), 1, tile), t_map),
            ],
            out_specs=pl.BlockSpec((pl.Squeezed(), 1, 1), lambda c, n, j: (c, 0, 0)),
            scratch_shapes=[pltpu.VMEM((1, tile), jnp.float32)],
        ),
        compiler_params=pltpu.CompilerParams(
            dimension_semantics=("parallel", "arbitrary", "arbitrary")),
    )(x, t)

    total = jnp.sum(out)
    if size_average:
        return total / jnp.float32(P)
    return total


def _focal_loss_ref(logits, target, *, gamma=2.0, ignore_index=255,
                    size_average=True):
    """Pure-JAX reference mirroring the PyTorch module."""
    N, C, H, W = logits.shape
    x = jnp.transpose(logits, (0, 2, 3, 1)).reshape(-1, C).astype(jnp.float32)
    t = target.reshape(-1).astype(jnp.int32)
    logp = jax.nn.log_softmax(x, axis=-1)
    t_safe = jnp.clip(t, 0, C - 1)
    logpt = -jnp.take_along_axis(logp, t_safe[:, None], axis=-1)[:, 0]
    valid = t != ignore_index
    logpt = jnp.where(valid, logpt, 0.0)
    pt = jnp.exp(-logpt)
    fl = jnp.where(valid, jnp.maximum(1.0 - pt, 0.0) ** gamma * logpt, 0.0)
    return fl.mean() if size_average else fl.sum()


if __name__ == "__main__":
    key = jax.random.PRNGKey(0)
    k1, k2, k3 = jax.random.split(key, 3)

    N, C, H, W = 2, 4, 16, 16
    logits = jax.random.normal(k1, (N, C, H, W), dtype=jnp.float32)
    target = jax.random.randint(k2, (N, H, W), 0, C, dtype=jnp.int32)
    # sprinkle in some ignore_index pixels
    ignore_mask = jax.random.bernoulli(k3, 0.1, (N, H, W))
    target = jnp.where(ignore_mask, 255, target)

    loss = focal_loss(logits, target, gamma=2.0, ignore_index=255,
                      size_average=True)
    loss = jax.block_until_ready(loss)

    ref = _focal_loss_ref(logits, target, gamma=2.0, ignore_index=255,
                          size_average=True)
    assert jnp.allclose(loss, ref, rtol=2e-5, atol=1e-5), (loss, ref)

    print("KERNEL_OK")
</pallas_src>

<mosaic_0001>
module attributes {stable_mosaic.version = 11 : i64} {
  func.func @_focal_kernel(%arg0: i32, %arg1: i32, %arg2: i32, %arg3: memref<1x4x256xf32, #tpu.memory_space<vmem>>, %arg4: memref<1x1x256xi32, #tpu.memory_space<vmem>>, %arg5: memref<1x1x1xf32, #tpu.memory_space<vmem>>, %arg6: memref<1x256xf32, #tpu.memory_space<vmem>>) attributes {dimension_semantics = [#tpu.dimension_semantics<parallel>, #tpu.dimension_semantics<arbitrary>, #tpu.dimension_semantics<arbitrary>], iteration_bounds = array<i64: 2, 2, 1>, scalar_prefetch = 0 : i64, scratch_operands = 1 : i64, tpu.core_type = #tpu.core_type<tc>, window_params = [{transform_indices = @transform_0, window_bounds = array<i64: 1, 4, 256>}, {transform_indices = @transform_1, window_bounds = array<i64: 1, 1, 256>}, {transform_indices = @transform_2, window_bounds = array<i64: 1, 1, 1>}]} {
    %c0_i32 = arith.constant 0 : i32
    %0 = arith.cmpi eq, %arg1, %c0_i32 : i32
    %c0_i32_0 = arith.constant 0 : i32
    %1 = arith.cmpi eq, %arg2, %c0_i32_0 : i32
    %2 = arith.andi %0, %1 : i1
    %3 = arith.extui %2 : i1 to i32
    %c0_i32_1 = arith.constant 0 : i32
    %4 = arith.cmpi ne, %3, %c0_i32_1 : i32
    scf.if %4 {
      %cst_22 = arith.constant 0.000000e+00 : f32
      %50 = vector.broadcast %cst_22 : f32 to vector<1x256xf32>
      %c0_23 = arith.constant 0 : index
      %c0_24 = arith.constant 0 : index
      %51 = vector.load %arg6[%c0_23, %c0_24] : memref<1x256xf32, #tpu.memory_space<vmem>>, vector<1x256xf32>
      tpu.vector_store %arg6[%c0_23, %c0_24], %50 {strides = array<i32>} : memref<1x256xf32, #tpu.memory_space<vmem>>, vector<1x256xf32>,
    } else {
    }
    %c0 = arith.constant 0 : index
    %c0_2 = arith.constant 0 : index
    %c0_3 = arith.constant 0 : index
    %5 = vector.load %arg3[%c0, %c0_2, %c0_3] : memref<1x4x256xf32, #tpu.memory_space<vmem>>, vector<1x4x256xf32>
    %6 = vector.shape_cast %5 : vector<1x4x256xf32> to vector<4x256xf32>
    %c0_4 = arith.constant 0 : index
    %c0_5 = arith.constant 0 : index
    %c0_6 = arith.constant 0 : index
    %7 = vector.load %arg4[%c0_4, %c0_5, %c0_6] : memref<1x1x256xi32, #tpu.memory_space<vmem>>, vector<1x1x256xi32>
    %8 = vector.shape_cast %7 : vector<1x1x256xi32> to vector<1x256xi32>
    %cst = arith.constant dense<0xFF800000> : vector<256xf32>
    %9 = vector.multi_reduction <maximumf>, %6, %cst [0] : vector<4x256xf32> to vector<256xf32>
    %10 = vector.shape_cast %9 : vector<256xf32> to vector<1x256xf32>
    %11 = vector.broadcast %10 : vector<1x256xf32> to vector<4x256xf32>
    %12 = arith.subf %6, %11 : vector<4x256xf32>
    %13 = math.exp %12 : vector<4x256xf32>
    %cst_7 = arith.constant dense<0.000000e+00> : vector<256xf32>
    %14 = vector.multi_reduction <add>, %13, %cst_7 [0] : vector<4x256xf32> to vector<256xf32>
    %15 = vector.shape_cast %14 : vector<256xf32> to vector<1x256xf32>
    %16 = math.log %15 : vector<1x256xf32>
    %17 = tpu.iota {dimensions = array<i32: 0>} : vector<4x256xi32>
    %18 = vector.broadcast %8 : vector<1x256xi32> to vector<4x256xi32>
    %19 = arith.cmpi eq, %17, %18 : vector<4x256xi32>
    %cst_8 = arith.constant 0.000000e+00 : f32
    %20 = vector.broadcast %cst_8 : f32 to vector<4x256xf32>
    %21 = arith.select %19, %12, %20 : vector<4x256xi1>, vector<4x256xf32>
    %cst_9 = arith.constant dense<0.000000e+00> : vector<256xf32>
    %22 = vector.multi_reduction <add>, %21, %cst_9 [0] : vector<4x256xf32> to vector<256xf32>
    %23 = vector.shape_cast %22 : vector<256xf32> to vector<1x256xf32>
    %cst_10 = arith.constant 0.000000e+00 : f32
    %24 = vector.broadcast %cst_10 : f32 to vector<4x256xf32>
    %25 = arith.select %19, %13, %24 : vector<4x256xi1>, vector<4x256xf32>
    %cst_11 = arith.constant dense<0.000000e+00> : vector<256xf32>
    %26 = vector.multi_reduction <add>, %25, %cst_11 [0] : vector<4x256xf32> to vector<256xf32>
    %27 = vector.shape_cast %26 : vector<256xf32> to vector<1x256xf32>
    %c255_i32 = arith.constant 255 : i32
    %28 = vector.broadcast %c255_i32 : i32 to vector<1x256xi32>
    %29 = arith.cmpi ne, %8, %28 : vector<1x256xi32>
    %30 = arith.subf %16, %23 : vector<1x256xf32>
    %cst_12 = arith.constant 0.000000e+00 : f32
    %31 = vector.broadcast %cst_12 : f32 to vector<1x256xf32>
    %32 = arith.select %29, %30, %31 : vector<1x256xi1>, vector<1x256xf32>
    %33 = arith.divf %27, %15 : vector<1x256xf32>
    %cst_13 = arith.constant 1.000000e+00 : f32
    %34 = vector.broadcast %cst_13 : f32 to vector<1x256xf32>
    %35 = arith.subf %34, %33 : vector<1x256xf32>
    %cst_14 = arith.constant 0.000000e+00 : f32
    %36 = vector.broadcast %cst_14 : f32 to vector<1x256xf32>
    %37 = arith.maximumf %35, %36 : vector<1x256xf32>
    %38 = arith.mulf %37, %37 : vector<1x256xf32>
    %39 = arith.mulf %38, %32 : vector<1x256xf32>
    %cst_15 = arith.constant 0.000000e+00 : f32
    %40 = vector.broadcast %cst_15 : f32 to vector<1x256xf32>
    %41 = arith.select %29, %39, %40 : vector<1x256xi1>, vector<1x256xf32>
    %c0_16 = arith.constant 0 : index
    %c0_17 = arith.constant 0 : index
    %42 = vector.load %arg6[%c0_16, %c0_17] : memref<1x256xf32, #tpu.memory_space<vmem>>, vector<1x256xf32>
    %43 = arith.addf %42, %41 : vector<1x256xf32>
    %c0_18 = arith.constant 0 : index
    %c0_19 = arith.constant 0 : index
    %44 = vector.load %arg6[%c0_18, %c0_19] : memref<1x256xf32, #tpu.memory_space<vmem>>, vector<1x256xf32>
    tpu.vector_store %arg6[%c0_18, %c0_19], %43 {strides = array<i32>} : memref<1x256xf32, #tpu.memory_space<vmem>>, vector<1x256xf32>,
    %c1_i32 = arith.constant 1 : i32
    %45 = arith.cmpi eq, %arg1, %c1_i32 : i32
    %c0_i32_20 = arith.constant 0 : i32
    %46 = arith.cmpi eq, %arg2, %c0_i32_20 : i32
    %47 = arith.andi %45, %46 : i1
    %48 = arith.extui %47 : i1 to i32
    %c0_i32_21 = arith.constant 0 : i32
    %49 = arith.cmpi ne, %48, %c0_i32_21 : i32
    scf.if %49 {
      %c0_22 = arith.constant 0 : index
      %c0_23 = arith.constant 0 : index
      %50 = vector.load %arg6[%c0_22, %c0_23] : memref<1x256xf32, #tpu.memory_space<vmem>>, vector<1x256xf32>
      %51 = vector.shape_cast %50 : vector<1x256xf32> to vector<1x1x256xf32>
      %cst_24 = arith.constant dense<0.000000e+00> : vector<1xf32>
      %52 = vector.multi_reduction <add>, %51, %cst_24 [1, 2] : vector<1x1x256xf32> to vector<1xf32>
      %53 = vector.shape_cast %52 : vector<1xf32> to vector<1x1x1xf32>
      %54 = vector.extract %53[0, 0, 0] : f32 from vector<1x1x1xf32>
      %55 = vector.broadcast %54 : f32 to vector<1x1xf32>
      %c0_25 = arith.constant 0 : index
      %c0_26 = arith.constant 0 : index
      %c0_27 = arith.constant 0 : index
      %56 = vector.load %arg5[%c0_25, %c0_26, %c0_27] : memref<1x1x1xf32, #tpu.memory_space<vmem>>, vector<1x1x1xf32>
      %57 = vector.shape_cast %56 : vector<1x1x1xf32> to vector<1x1xf32>
      %58 = vector.shape_cast %55 : vector<1x1xf32> to vector<1x1x1xf32>
      tpu.vector_store %arg5[%c0_25, %c0_26, %c0_27], %58 {strides = array<i32>} : memref<1x1x1xf32, #tpu.memory_space<vmem>>, vector<1x1x1xf32>,
    } else {
    }
    return
  }
  func.func @transform_0(%arg0: i32, %arg1: i32, %arg2: i32) -> (i32, i32, i32) {
    %c1_i32 = arith.constant 1 : i32
    %0 = arith.muli %arg0, %c1_i32 : i32
    %1 = arith.addi %0, %arg2 : i32
    %c0_i32 = arith.constant 0 : i32
    %c0_i32_0 = arith.constant 0 : i32
    return %arg1, %c0_i32, %1 : i32, i32, i32
  }
  func.func @transform_1(%arg0: i32, %arg1: i32, %arg2: i32) -> (i32, i32, i32) {
    %c1_i32 = arith.constant 1 : i32
    %0 = arith.muli %arg0, %c1_i32 : i32
    %1 = arith.addi %0, %arg2 : i32
    %c0_i32 = arith.constant 0 : i32
    %c0_i32_0 = arith.constant 0 : i32
    return %arg1, %c0_i32, %1 : i32, i32, i32
  }
  func.func @transform_2(%arg0: i32, %arg1: i32, %arg2: i32) -> (i32, i32, i32) {
    %c0_i32 = arith.constant 0 : i32
    %c0_i32_0 = arith.constant 0 : i32
    %c0_i32_1 = arith.constant 0 : i32
    return %arg0, %c0_i32, %c0_i32_0 : i32, i32, i32
  }
}

</mosaic_0001>

<llo_original>
// kernel: tpu_custom_call.1
$region0: #{tpu_custom_call.1}
  #allocation0 [shape = 'u32[]', space=smem, size = 0x4, offset = 0x4, fixed_abs, tag = 'smem constant byte address 0x4 - core index']
  #allocation1 [shape = 'u32[144,128]{1,0:T(1,128)}', space=vmem, size = 0x12000, scoped, tag = 'internal scratch']
  #allocation2 [shape = 'f32[1,256]{1,0:T(1,128)}', space=vmem, size = 0x400, scoped, tag = 'scratch operand']
  %s0 = inlined_call_operand.hbm [shape: f32[2,4,512], index: 0, kind: input, shape index: {}]
  %s1 = inlined_call_operand.hbm [shape: s32[2,1,512], index: 1, kind: input, shape index: {}]
  %s2 = inlined_call_operand.vmem [shape: f32[2,1,1], index: 2, kind: output, shape index: {}]
  %s3 = sld [smem:[#allocation0]]
  $region57: #{tpu_custom_call.1} parent=0
    _
  %s5 = ssub.s32 1, %s3
  %s6 = scalar_select 0, %s5, %s3
  $region1: #{tpu_custom_call.1} parent=0
    #allocation3 [shape = 'u8[8192]{0}', space=vmem, size = 0x2000, scoped, tag = 'input window, operand 0']
    #allocation4 [shape = 's32[2]{0}', space=sflag, size = 0x8, scoped, tag = 'scoped memory for tpu_custom_call.1']
    #allocation5 [shape = 'u8[2048]{0}', space=vmem, size = 0x800, scoped, tag = 'input window, operand 1']
    #allocation6 [shape = 's32[2]{0}', space=sflag, size = 0x8, scoped, tag = 'scoped memory for tpu_custom_call.1']
    %7 = vsyncpa [#allocation4], 0
    %s8 = scalar_lea.sflag [#allocation4], 1
    %9 = vsyncpa %s8, 0
    %10 = vsyncpa [#allocation6], 0
    %s11 = scalar_lea.sflag [#allocation6], 1
    %12 = vsyncpa %s11, 0
    loop: start=0, step=1, limit=6
    $region2: #{tpu_custom_call.1} parent=1 // loop_pre_header
      _
    $region3: #{tpu_custom_call.1} parent=1 // loop_header
      %s14 = sphi 0, %s18
      %p15 = scmp.ge.s32.totalorder %s14, 6
      %s21 = sphi 0, %s40
      %s22 = sphi 0, %s36
      %s23 = sphi 0, %s32
      %s24 = sphi 0, %s21
      %s25 = sphi 0, %s22
      %s26 = sphi 0, %s23
      %s27 = sphi 0, %s24
      %s28 = sphi 0, %s25
      %s29 = sphi 0, %s26
      %s47 = sphi 0, %s49
      %s50 = sphi 0, %s47
      %s51 = sphi 0, %s50
      %s67 = sphi 0, %s51
      %s77 = sphi 0, %s79
      %s80 = sphi 0, %s77
      %s81 = sphi 0, %s80
      %s97 = sphi 0, %s81
      %s103 = sphi 0, %s105
      %s106 = sphi 0, %s103
      %s107 = sphi 0, %s106
      %s123 = sphi 0, %s107
    $region4: #{tpu_custom_call.1} parent=1 // loop_header_branch
      %17 = sbr.rel (%p15) target = $region8
    $region5: #{tpu_custom_call.1} parent=1 // loop_body
      %s19 = ssub.s32 %s14, 1
      %s20 = ssub.s32 %s14, 2
      %s30 = sadd.s32 1, %s23
      %p31 = scmp.ge.s32.totalorder %s30, 1
      %s32 = scalar_select %p31, 0, %s30
      %s33 = sadd.s32 1, %s22
      %s34 = scalar_select %p31, %s33, %s22
      %p35 = scmp.ge.s32.totalorder %s34, 2
      %s36 = scalar_select %p35, 0, %s34
      %s37 = sadd.s32 1, %s21
      %s38 = scalar_select %p35, %s37, %s21
      %p39 = scmp.ge.s32.totalorder %s38, 2
      %s40 = scalar_select %p39, 0, %s38
      %s41 = sadd.s32 %s21, %s23
      %s42 = sadd.s32 %s40, %s32
      %s43 = ssub.s32 %s22, %s36
      %s44 = ssub.s32 %s41, %s42
      %s45 = sor.u32 %s43, %s44
      %p46 = scmp.eq.s32.totalorder %s45, 0
      %s48 = sadd.s32 %s47, 1
      %s49 = scalar_select %p46, %s47, %s48
      %p52 = pneg %p46
      %p53 = scmp.eq.s32.totalorder %s14, 3
      %p54 = por %p52, %p53
      %p55 = scmp.ne.s32.totalorder %s47, %s50
      %p56 = scmp.eq.s32.totalorder %s14, 0
      %p57 = por %p55, %p56
      %p58 = scmp.ne.s32.totalorder %s47, %s50
      %p59 = scmp.eq.s32.totalorder %s19, 3
      %p60 = por %p58, %p59
      %p61 = scmp.ne.s32.totalorder %s50, %s51
      %p62 = scmp.eq.s32.totalorder %s19, 0
      %p63 = por %p61, %p62
      %p64 = scmp.ne.s32.totalorder %s50, %s51
      %p65 = scmp.eq.s32.totalorder %s20, 3
      %p66 = por %p64, %p65
      %p68 = scmp.ne.s32.totalorder %s51, %s67
      %p69 = scmp.eq.s32.totalorder %s20, 0
      %p70 = por %p68, %p69
      %s71 = sadd.s32 %s21, %s23
      %s72 = sadd.s32 %s40, %s32
      %s73 = ssub.s32 %s22, %s36
      %s74 = ssub.s32 %s71, %s72
      %s75 = sor.u32 %s73, %s74
      %p76 = scmp.eq.s32.totalorder %s75, 0
      %s78 = sadd.s32 %s77, 1
      %s79 = scalar_select %p76, %s77, %s78
      %p82 = pneg %p76
      %p83 = scmp.eq.s32.totalorder %s14, 3
      %p84 = por %p82, %p83
      %p85 = scmp.ne.s32.totalorder %s77, %s80
      %p86 = scmp.eq.s32.totalorder %s14, 0
      %p87 = por %p85, %p86
      %p88 = scmp.ne.s32.totalorder %s77, %s80
      %p89 = scmp.eq.s32.totalorder %s19, 3
      %p90 = por %p88, %p89
      %p91 = scmp.ne.s32.totalorder %s80, %s81
      %p92 = scmp.eq.s32.totalorder %s19, 0
      %p93 = por %p91, %p92
      %p94 = scmp.ne.s32.totalorder %s80, %s81
      %p95 = scmp.eq.s32.totalorder %s20, 3
      %p96 = por %p94, %p95
      %p98 = scmp.ne.s32.totalorder %s81, %s97
      %p99 = scmp.eq.s32.totalorder %s20, 0
      %p100 = por %p98, %p99
      %s101 = ssub.s32 %s21, %s40
      %p102 = scmp.eq.s32.totalorder %s101, 0
      %s104 = sadd.s32 %s103, 1
      %s105 = scalar_select %p102, %s103, %s104
      %p108 = pneg %p102
      %p109 = scmp.eq.s32.totalorder %s14, 3
      %p110 = por %p108, %p109
      %p111 = scmp.ne.s32.totalorder %s103, %s106
      %p112 = scmp.eq.s32.totalorder %s14, 0
      %p113 = por %p111, %p112
      %p114 = scmp.ne.s32.totalorder %s103, %s106
      %p115 = scmp.eq.s32.totalorder %s19, 3
      %p116 = por %p114, %p115
      %p117 = scmp.ne.s32.totalorder %s106, %s107
      %p118 = scmp.eq.s32.totalorder %s19, 0
      %p119 = por %p117, %p118
      %p120 = scmp.ne.s32.totalorder %s106, %s107
      %p121 = scmp.eq.s32.totalorder %s20, 3
      %p122 = por %p120, %p121
      %p124 = scmp.ne.s32.totalorder %s107, %s123
      %p125 = scmp.eq.s32.totalorder %s20, 0
      %p126 = por %p124, %p125
      %p127 = scmp.le.s32.totalorder 1, %s14
      %p128 = scmp.lt.s32.totalorder %s14, 5
      %p129 = pnand %p127, %p128
      %p130 = pneg %p129
      // Predicated region
      $region9: #{tpu_custom_call.1} parent=5 // pred_check
        _
      $region10: #{tpu_custom_call.1} parent=5 // pred_check_branch
        %132 = sbr.rel (%p129) target = $region12
      $region11: #{tpu_custom_call.1} parent=5 // pred_region
        %s133 = ssub.s32 %s14, 1
      $region12: #{tpu_custom_call.1} parent=5 // pred_fallthru
        _
      %p134 = scmp.lt.s32.totalorder %s14, 4
      // Predicated region
      $region13: #{tpu_custom_call.1} parent=5 // pred_check
        %p135 = pneg %p134
      $region14: #{tpu_custom_call.1} parent=5 // pred_check_branch
        %137 = sbr.rel (%p135) target = $region16
      $region15: #{tpu_custom_call.1} parent=5 // pred_region
        // Predicated region
        $region17: #{tpu_custom_call.1} parent=15 // pred_check
          %p138 = pneg %p57
        $region18: #{tpu_custom_call.1} parent=15 // pred_check_branch
          %140 = sbr.rel (%p138) target = $region20
        $region19: #{tpu_custom_call.1} parent=15 // pred_region
          %s141 = sand.u32 %s47, 1
          %s142 = scalar_lea.sflag [#allocation4], %s141
          %s143 = sand.u32 %s47, 1
          %s144 = smul.addr %s143, 8
          %s145 = scalar_lea.vmem [#allocation3], %s144
          %s146 = sadd.s32 %s21, %s23
          %s147 = smul.u32 2, %s146
          %s149 = ssub.s32 128, 128
          %150 = vsyncadd %s142, %s149
          %s151 = smul.addr %s22, 4
          %s152 = sadd.s32 %s147, %s151
          %s153 = smul.addr %s152, 64
          %s154 = scalar_lea.hbm %s0, %s153
          %s156 = sshll.u32 %s145, 4
          %s157 = int_to_ptr.vmem [resolvable:$true] %s156
          %159 = dma.hbm_to_vmem [thread:$0]  %s154, 128, %s157, %s142
        $region20: #{tpu_custom_call.1} parent=15 // pred_fallthru
          _
        // Predicated region
        $region21: #{tpu_custom_call.1} parent=15 // pred_check
          %p160 = pneg %p87
        $region22: #{tpu_custom_call.1} parent=15 // pred_check_branch
          %162 = sbr.rel (%p160) target = $region24
        $region23: #{tpu_custom_call.1} parent=15 // pred_region
          %s163 = sand.u32 %s77, 1
          %s164 = scalar_lea.sflag [#allocation6], %s163
          %s165 = sand.u32 %s77, 1
          %s166 = smul.addr %s165, 2
          %s167 = scalar_lea.vmem [#allocation5], %s166
          %s168 = sadd.s32 %s21, %s23
          %s169 = smul.u32 2, %s168
          %s171 = ssub.s32 32, 32
          %172 = vsyncadd %s164, %s171
          %s173 = smul.addr %s22, 4
          %s174 = sadd.s32 %s169, %s173
          %s175 = smul.addr %s174, 16
          %s176 = scalar_lea.hbm %s1, %s175
          %s178 = sshll.u32 %s167, 4
          %s179 = int_to_ptr.vmem [resolvable:$true] %s178
          %181 = dma.hbm_to_vmem [thread:$0]  %s176, 32, %s179, %s164
        $region24: #{tpu_custom_call.1} parent=15 // pred_fallthru
          _
      $region16: #{tpu_custom_call.1} parent=5 // pred_fallthru
        _
      %p182 = scmp.le.s32.totalorder 1, %s14
      %p183 = scmp.lt.s32.totalorder %s14, 5
      %p184 = pnand %p182, %p183
      %p185 = pneg %p184
      // Predicated region
      $region25: #{tpu_custom_call.1} parent=5 // pred_check
        _
      $region26: #{tpu_custom_call.1} parent=5 // pred_check_branch
        %187 = sbr.rel (%p184) target = $region28
      $region27: #{tpu_custom_call.1} parent=5 // pred_region
        %s188 = ssub.s32 %s14, 1
        %s189 = sand.u32 %s50, 1
        %s190 = scalar_lea.sflag [#allocation4], %s189
        %s191 = sand.u32 %s50, 1
        %s192 = smul.addr %s191, 8
        %s193 = scalar_lea.vmem [#allocation3], %s192
        // Predicated region
        $region29: #{tpu_custom_call.1} parent=27 // pred_check
          %p194 = pneg %p63
        $region30: #{tpu_custom_call.1} parent=27 // pred_check_branch
          %196 = sbr.rel (%p194) target = $region32
        $region31: #{tpu_custom_call.1} parent=27 // pred_region
          %197 = dma.done %s190, 128
        $region32: #{tpu_custom_call.1} parent=27 // pred_fallthru
          _
        %s198 = sand.u32 %s80, 1
        %s199 = scalar_lea.sflag [#allocation6], %s198
        %s200 = sand.u32 %s80, 1
        %s201 = smul.addr %s200, 2
        %s202 = scalar_lea.vmem [#allocation5], %s201
        // Predicated region
        $region33: #{tpu_custom_call.1} parent=27 // pred_check
          %p203 = pneg %p93
        $region34: #{tpu_custom_call.1} parent=27 // pred_check_branch
          %205 = sbr.rel (%p203) target = $region36
        $region35: #{tpu_custom_call.1} parent=27 // pred_region
          %206 = dma.done %s199, 32
        $region36: #{tpu_custom_call.1} parent=27 // pred_fallthru
          _
        %s207 = sand.u32 %s50, 1
        %s208 = scalar_lea.sflag [#allocation4], %s207
        %s209 = sand.u32 %s50, 1
        %s210 = smul.addr %s209, 8
        %s211 = scalar_lea.vmem [#allocation3], %s210
        %p212 = pneg %p63
        %p213 = pneg %p60
        %s214 = sand.u32 %s80, 1
        %s215 = scalar_lea.sflag [#allocation6], %s214
        %s216 = sand.u32 %s80, 1
        %s217 = smul.addr %s216, 2
        %s218 = scalar_lea.vmem [#allocation5], %s217
        %p219 = pneg %p93
        %p220 = pneg %p90
        %p221 = pneg %p119
        %p222 = pneg %p116
        %p223 = scmp.lt.s32.totalorder %s24, 1
        %s224 = scalar_select %p223, %s24, 1
        %s225 = scalar_lea.vmem %s2, %s224
        %s226 = sadd.s32 %s24, %s26
        %s227 = smul.u32 2, %s226
        %s228 = sadd.s32 %s24, %s26
        %s229 = smul.u32 2, %s228
        %p230 = scmp.lt.s32.totalorder %s24, 1
        %s231 = scalar_select %p230, %s24, 1
        %s232 = scalar_lea.vmem %s2, %s231
        %p233 = scmp.eq.s32.totalorder %s25, 0
        %p234 = scmp.eq.s32.totalorder %s26, 0
        %p235 = pnand %p233, %p234
        %p236 = pneg %p235
        // Predicated region
        $region37: #{tpu_custom_call.1} parent=27 // pred_check
          _
        $region38: #{tpu_custom_call.1} parent=27 // pred_check_branch
          %238 = sbr.rel (%p235) target = $region40
        $region39: #{tpu_custom_call.1} parent=27 // pred_region
          %v239 = vlaneseq
          %vm240 = vcmp.ge.s32.totalorder %v239, 0
          %vm241 = vcmp.lt.s32.totalorder %v239, 256
          %vm242 = vmand %vm240, %vm241
          %243 = vst.msk [vmem:[#allocation2] sm:$0x3] %vm242, 0.0
        $region40: #{tpu_custom_call.1} parent=27 // pred_fallthru
          _
        %v244 = vld [vmem:[%s193] sm:$0xff]
        %v245 = vld [vmem:[%s202] sm:$0x3]
        %v247 = vcombine.high %v244, %v244
        %vm249 = vcmask 1043456
        %v250 = vsel %vm249, %v244, -inf
        %v251 = vrot.slane %v250, 4
        %v252 = vmax.f32 %v250, %v251
        %v253 = vrot.slane %v252, 2
        %v254 = vmax.f32 %v252, %v253
        %v255 = vrot.slane %v254, 1
        %v256 = vmax.f32 %v254, %v255
        %v257 = vsel %vm249, %v247, -inf
        %v258 = vrot.slane %v257, 4
        %v259 = vmax.f32 %v257, %v258
        %v260 = vrot.slane %v259, 2
        %v261 = vmax.f32 %v259, %v260
        %v262 = vrot.slane %v261, 1
        %v263 = vmax.f32 %v261, %v262
        %v266 = vcombine.low %v256, %v263
        %v268 = vsub.f32 %v244, %v266
        %v269 = vmul.f32 %v268, 1.442695
        %v270 = vpow.pop %v269
        %v272 = vcombine.high %v270, %v270
        %v274 = vsel %vm249, %v270, 0.0
        %v275 = vrot.slane %v274, 4
        %v276 = vadd.f32 %v274, %v275
        %v277 = vrot.slane %v276, 2
        %v278 = vadd.f32 %v276, %v277
        %v279 = vrot.slane %v278, 1
        %v280 = vadd.f32 %v278, %v279
        %v281 = vsel %vm249, %v272, 0.0
        %v282 = vrot.slane %v281, 4
        %v283 = vadd.f32 %v281, %v282
        %v284 = vrot.slane %v283, 2
        %v285 = vadd.f32 %v283, %v284
        %v286 = vrot.slane %v285, 1
        %v287 = vadd.f32 %v285, %v286
        %v288 = vlog2.pop %v280
        %v289 = vmul.f32 %v288, 0.6931472
        %v290 = vlog2.pop %v287
        %v291 = vmul.f32 %v290, 0.6931472
        %v292 = vlaneseq
        %v293 = vshrl.u32 %v292, 7
        %v294 = vlaneseq
        %v295 = vshrl.u32 %v294, 7
        %v296 = vsub.s32 0, %v295
        %v297 = vrot.slane %v245, %v296
        %v298 = vlaneseq
        %v299 = vshrl.u32 %v298, 7
        %v300 = vsub.s32 1, %v299
        %v301 = vrot.slane %v245, %v300
        %vm302 = vcmp.eq.s32.totalorder %v293, %v297
        %vm303 = vcmp.eq.s32.totalorder %v293, %v301
        %v305 = vcombine.high %v268, %v268
        %v307 = vsel %vm302, %v268, 0.0
        %v308 = vsel %vm303, %v305, 0.0
        %v309 = vsel %vm249, %v307, 0.0
        %v310 = vrot.slane %v309, 4
        %v311 = vadd.f32 %v309, %v310
        %v312 = vrot.slane %v311, 2
        %v313 = vadd.f32 %v311, %v312
        %v314 = vrot.slane %v313, 1
        %v315 = vadd.f32 %v313, %v314
        %v316 = vsel %vm249, %v308, 0.0
        %v317 = vrot.slane %v316, 4
        %v318 = vadd.f32 %v316, %v317
        %v319 = vrot.slane %v318, 2
        %v320 = vadd.f32 %v318, %v319
        %v321 = vrot.slane %v320, 1
        %v322 = vadd.f32 %v320, %v321
        %v323 = vsel %vm302, %v270, 0.0
        %v324 = vsel %vm303, %v272, 0.0
        %v325 = vsel %vm249, %v323, 0.0
        %v326 = vrot.slane %v325, 4
        %v327 = vadd.f32 %v325, %v326
        %v328 = vrot.slane %v327, 2
        %v329 = vadd.f32 %v327, %v328
        %v330 = vrot.slane %v329, 1
        %v331 = vadd.f32 %v329, %v330
        %v332 = vsel %vm249, %v324, 0.0
        %v333 = vrot.slane %v332, 4
        %v334 = vadd.f32 %v332, %v333
        %v335 = vrot.slane %v334, 2
        %v336 = vadd.f32 %v334, %v335
        %v337 = vrot.slane %v336, 1
        %v338 = vadd.f32 %v336, %v337
        %vm339 = vcmp.ne.s32.totalorder %v245, 255
        %v340 = vsub.f32 %v289, %v315
        %v341 = vsub.f32 %v291, %v322
        %v344 = vcombine.low %v340, %v341
        %v346 = vunpack.c.l.s4 1966171168
        %v347 = vunpack.c.0.s8 %v346
        %v348 = vlaneseq
        %v349 = vshrl.u32 %v348, 7
        %v350 = vsub.s32 %v347, %v349
        %v351 = vrot.slane %v344, %v350
        %v353 = vunpack.c.l.s4 1966171168
        %v354 = vunpack.c.0.s8 %v353
        %v355 = vlaneseq
        %v356 = vshrl.u32 %v355, 7
        %v357 = vsub.s32 %v354, %v356
        %v358 = vrot.slane %v351, %v357
        %v360 = vsel %vm339, %v358, 0.0
        %v361 = vrcp.pop %v280
        %v362 = vmul.f32 %v331, %v361
        %v363 = vrcp.pop %v287
        %v364 = vmul.f32 %v338, %v363
        %v365 = vsub.f32 1.0, %v362
        %v366 = vsub.f32 1.0, %v364
        %v367 = vmax.f32 %v365, 0.0
        %v368 = vmax.f32 %v366, 0.0
        %v369 = vmul.f32 %v367, %v367
        %v370 = vmul.f32 %v368, %v368
        %v372 = vlaneseq
        %v373 = vshrl.u32 %v372, 7
        %v374 = vsub.s32 0, %v373
        %v375 = vrot.slane %v360, %v374
        %v376 = vlaneseq
        %v377 = vshrl.u32 %v376, 7
        %v378 = vsub.s32 1, %v377
        %v379 = vrot.slane %v360, %v378
        %v382 = vmul.f32 %v369, %v375
        %v383 = vmul.f32 %v370, %v379
        %v386 = vcombine.low %v382, %v383
        %v388 = vunpack.c.l.s4 1966171168
        %v389 = vunpack.c.0.s8 %v388
        %v390 = vlaneseq
        %v391 = vshrl.u32 %v390, 7
        %v392 = vsub.s32 %v389, %v391
        %v393 = vrot.slane %v386, %v392
        %v395 = vunpack.c.l.s4 1966171168
        %v396 = vunpack.c.0.s8 %v395
        %v397 = vlaneseq
        %v398 = vshrl.u32 %v397, 7
        %v399 = vsub.s32 %v396, %v398
        %v400 = vrot.slane %v393, %v399
        %v402 = vsel %vm339, %v400, 0.0
        %v403 = vld [vmem:[#allocation2] sm:$0x3]
        %v404 = vadd.f32 %v403, %v402
        %v405 = vlaneseq
        %vm406 = vcmp.ge.s32.totalorder %v405, 0
        %vm407 = vcmp.lt.s32.totalorder %v405, 256
        %vm408 = vmand %vm406, %vm407
        %409 = vst.msk [vmem:[#allocation2] sm:$0x3] %vm408, %v404
        %p410 = scmp.eq.s32.totalorder %s25, 1
        %p411 = pnand %p410, %p234
        %p412 = pneg %p411
        // Predicated region
        $region41: #{tpu_custom_call.1} parent=27 // pred_check
          _
        $region42: #{tpu_custom_call.1} parent=27 // pred_check_branch
          %414 = sbr.rel (%p411) target = $region44
        $region43: #{tpu_custom_call.1} parent=27 // pred_region
          %v415 = vld [vmem:[#allocation2] sm:$0x3]
          %v417 = vlaneseq
          %v418 = vshrl.u32 %v417, 7
          %v419 = vsub.s32 0, %v418
          %v420 = vrot.slane %v415, %v419
          %v421 = vlaneseq
          %v422 = vshrl.u32 %v421, 7
          %v423 = vsub.s32 1, %v422
          %v424 = vrot.slane %v415, %v423
          %vm427 = vcmask 1040384
          %v428 = vsel %vm427, %v420, 0.0
          %v429 = vsel %vm427, %v424, 0.0
          %v430 = vadd.f32 %v428, %v429
          %431 = vadd.xlane.f32.xlu0 %v430
          %v432 = vpop.xlane.xlu0 %431
          %v433 = vrot.slane %v432, 4
          %v434 = vadd.f32 %v432, %v433
          %v435 = vrot.slane %v434, 2
          %v436 = vadd.f32 %v434, %v435
          %v437 = vrot.slane %v436, 1
          %v438 = vadd.f32 %v436, %v437
          %s439 = vtos %v438
          %v440 = vstv %s439
          %vm441 = vcmask 0
          %442 = vst.msk [vmem:[%s232] sm:$0x1] %vm441, %v440
        $region44: #{tpu_custom_call.1} parent=27 // pred_fallthru
          _
        %p443 = scmp.lt.s32.totalorder %s24, 1
        %s444 = scalar_select %p443, %s24, 1
        %s445 = scalar_lea.vmem %s2, %s444
        // Predicated region
        $region45: #{tpu_custom_call.1} parent=27 // pred_check
          %p446 = pneg %p116
        $region46: #{tpu_custom_call.1} parent=27 // pred_check_branch
          %448 = sbr.rel (%p446) target = $region48
        $region47: #{tpu_custom_call.1} parent=27 // pred_region
          _
        $region48: #{tpu_custom_call.1} parent=27 // pred_fallthru
          _
      $region28: #{tpu_custom_call.1} parent=5 // pred_fallthru
        _
      %p449 = scmp.le.s32.totalorder 2, %s14
      // Predicated region
      $region49: #{tpu_custom_call.1} parent=5 // pred_check
        %p450 = pneg %p449
      $region50: #{tpu_custom_call.1} parent=5 // pred_check_branch
        %452 = sbr.rel (%p450) target = $region52
      $region51: #{tpu_custom_call.1} parent=5 // pred_region
        %s453 = ssub.s32 %s14, 2
        // Predicated region
        $region53: #{tpu_custom_call.1} parent=51 // pred_check
          %p454 = pneg %p122
        $region54: #{tpu_custom_call.1} parent=51 // pred_check_branch
          %456 = sbr.rel (%p454) target = $region56
        $region55: #{tpu_custom_call.1} parent=51 // pred_region
          %p457 = scmp.lt.s32.totalorder %s27, 1
          %s458 = scalar_select %p457, %s27, 1
          %s459 = scalar_lea.vmem %s2, %s458
        $region56: #{tpu_custom_call.1} parent=51 // pred_fallthru
          _
      $region52: #{tpu_custom_call.1} parent=5 // pred_fallthru
        _
    $region6: #{tpu_custom_call.1} parent=1 // loop_footer
      %s18 = sadd.s32 1, %s14
    $region7: #{tpu_custom_call.1} parent=1 // loop_footer_branch
      %13 = sbr.rel target = $region3
    $region8: #{tpu_custom_call.1} parent=1 // loop_exit
      _
    %460 = vsyncpa [#allocation4], 1
    %s461 = scalar_lea.sflag [#allocation4], 1
    %462 = vsyncpa %s461, 1
    %463 = vsyncpa [#allocation6], 1
    %s464 = scalar_lea.sflag [#allocation6], 1
    %465 = vsyncpa %s464, 1

</llo_original>
